<compile_context>
chip_gen: v6e
topology: v6e:2x2x1
jax: 0.10.0
libtpu: 0.0.40
codegen_flags: <defaults>
</compile_context>

<pallas_src>
import functools

import jax
import jax.numpy as jnp
from jax.experimental import pallas as pl
from jax.experimental.pallas import tpu as pltpu


def _cdiv(a, b):
    return -(-a // b)


def _round_up(x, m):
    return ((x + m - 1) // m) * m


def _device_kind():
    try:
        return jax.devices()[0].device_kind.lower()
    except Exception:
        return ""


def _loss_kernel(out_ref, tgt_ref, w_ref, part_ref, acc_ref, *,
                 mode, nc, hw, tl, r_per, needs_row_mask, needs_lane_mask):
    r = pl.program_id(1)   # row-tile index within this parallel partition
    l = pl.program_id(2)   # lane-tile index (innermost)

    @pl.when(jnp.logical_and(r == 0, l == 0))
    def _():
        acc_ref[...] = jnp.zeros_like(acc_ref)

    # subtract / abs / square in the native dtype (bf16 VPU on v6e/v7x);
    # widen to f32 only for the accumulation path.
    diff = out_ref[...] - tgt_ref[...]
    if mode == "L1":
        val = jnp.abs(diff)
    elif mode == "L2":
        val = diff * diff
    else:
        raise ValueError(f"Unsupported loss mode: {mode}")
    val = val.astype(jnp.float32)

    if needs_lane_mask:
        # mask garbage lanes of the ragged last lane tile before the reduce
        lane = jax.lax.broadcasted_iota(jnp.int32, val.shape, 1) + l * tl
        val = jnp.where(lane < hw, val, 0.0)

    # lane reduce (XLU slot, has slack) -> (TM, 1); ONE weight mul per row,
    # not per element (deferred weight multiply).
    row_sum = jnp.sum(val, axis=-1, keepdims=True)
    contrib = row_sum * w_ref[...]

    if needs_row_mask:
        # mask garbage rows of the ragged last row tile (after the weight mul,
        # so garbage weights cannot leak NaNs either)
        p = pl.program_id(0)
        tm = contrib.shape[0]
        row = (jax.lax.broadcasted_iota(jnp.int32, (tm, 1), 0)
               + (p * r_per + r) * tm)
        contrib = jnp.where(row < nc, contrib, 0.0)

    acc_ref[...] += contrib

    @pl.when(jnp.logical_and(r == pl.num_programs(1) - 1,
                             l == pl.num_programs(2) - 1))
    def _():
        # tiny end-of-partition reduce of the (TM, 1) accumulator
        part_ref[...] = jnp.sum(acc_ref[...]).reshape(1, 1, 1)


def channel_weighted_loss(output, target, weights, mode="L1",
                          block_bytes=8 * 1024 * 1024):
    """output, target: (N, C, H, W).  weights: (C,) float.  Returns scalar f32."""
    if mode not in ("L1", "L2"):
        raise ValueError(f"Unsupported loss mode: {mode}")

    N, C, H, W = output.shape
    NC, HW = N * C, H * W
    inv_count = 1.0 / float(N * C * H * W)

    itemsize = jnp.dtype(output.dtype).itemsize
    row_align = {4: 8, 2: 16, 1: 32}.get(itemsize, 8)

    kind = _device_kind()
    is_v7 = "v7" in kind
    # per-generation VMEM budget: v7x has 64 MiB physical, v5e/v6e have 128 MiB
    vmem_limit = (48 if is_v7 else 64) * 1024 * 1024
    # 2 inputs x 2 pipeline buffers of `block_bytes` must fit with headroom
    block_bytes = max(4096, min(block_bytes, vmem_limit // 5))

    # ---- flattened, UN-padded slab views (reshape is free; no HBM copies) ----
    out2d = output.reshape(NC, HW)
    tgt2d = target.reshape(NC, HW)
    # per-row channel weight: row r of the (N*C, HW) slab has channel r % C
    w_rows = jnp.tile(weights.astype(jnp.float32), (N,)).reshape(NC, 1)

    # ---- lane tiling: full-extent (lane-dense, mask-free) whenever it fits ----
    MAX_TL = 32 * 1024
    if HW <= MAX_TL:
        TL, L = HW, 1
    else:
        L0 = _cdiv(HW, MAX_TL)
        TL = _round_up(_cdiv(HW, L0), 128)   # balanced, >= ~16K lanes, 128-aligned
        L = _cdiv(HW, TL)

    # ---- row tiling: ~block_bytes of native dtype per input block ----
    rows_budget = max(row_align, block_bytes // max(1, TL * itemsize))
    if rows_budget >= NC:
        TM = NC                                   # full extent — always legal
    else:
        TM = max(row_align, (rows_budget // row_align) * row_align)
    R_total = _cdiv(NC, TM)

    # ---- megacore split: only where there are really 2 TensorCores (v7x) ----
    P = 2 if (is_v7 and R_total >= 2 and R_total % 2 == 0) else 1
    R = R_total // P

    needs_row_mask = (P * R * TM) > NC
    needs_lane_mask = (L > 1) and (HW % TL != 0)

    kernel = functools.partial(
        _loss_kernel, mode=mode, nc=NC, hw=HW, tl=TL, r_per=R,
        needs_row_mask=needs_row_mask, needs_lane_mask=needs_lane_mask)

    bytes_accessed = 2 * NC * HW * itemsize + NC * 4 + P * 4
    cost = pl.CostEstimate(flops=4 * NC * HW, transcendentals=0,
                           bytes_accessed=bytes_accessed)

    partials = pl.pallas_call(
        kernel,
        out_shape=jax.ShapeDtypeStruct((P, 1, 1), jnp.float32),
        grid_spec=pltpu.PrefetchScalarGridSpec(
            num_scalar_prefetch=0,
            grid=(P, R, L),
            in_specs=[
                pl.BlockSpec((TM, TL), lambda p, r, l: (p * R + r, l)),
                pl.BlockSpec((TM, TL), lambda p, r, l: (p * R + r, l)),
                # weight block index changes only when the row tile changes
                pl.BlockSpec((TM, 1), lambda p, r, l: (p * R + r, 0)),
            ],
            out_specs=pl.BlockSpec((1, 1, 1), lambda p, r, l: (p, 0, 0)),
            scratch_shapes=[pltpu.VMEM((TM, 1), jnp.float32)],
        ),
        compiler_params=pltpu.CompilerParams(
            dimension_semantics=("parallel", "arbitrary", "arbitrary"),
            vmem_limit_bytes=vmem_limit,
        ),
        cost_estimate=cost,
    )(out2d, tgt2d, w_rows)

    return jnp.sum(partials) * inv_count


def _reference(output, target, weights, mode="L1"):
    w = weights.reshape(1, -1, 1, 1).astype(jnp.float32)
    diff = output.astype(jnp.float32) - target.astype(jnp.float32)
    if mode == "L1":
        return jnp.mean(jnp.abs(diff) * w)
    return jnp.mean((diff * diff) * w)


if __name__ == "__main__":
    key = jax.random.PRNGKey(0)
    k1, k2, k3, k4, k5, k6 = jax.random.split(key, 6)

    ok = True

    def check(out, tgt, w, mode, **kw):
        global ok
        got = jax.block_until_ready(channel_weighted_loss(out, tgt, w, mode=mode, **kw))
        want = _reference(out, tgt, w, mode=mode)
        if not jnp.allclose(got, want, rtol=2e-5, atol=1e-6):
            ok = False
            print(f"MISMATCH mode={mode} shape={out.shape}: got={got}, want={want}")

    # Primary case from the module: NCHW = (2, 4, 16, 16), C=4 channel weights.
    weights4 = jnp.array([0.5, 1.0, 1.5, 2.0], dtype=jnp.float32)
    o1 = jax.random.normal(k1, (2, 4, 16, 16), dtype=jnp.float32)
    t1 = jax.random.normal(k2, (2, 4, 16, 16), dtype=jnp.float32)
    for mode in ("L1", "L2"):
        check(o1, t1, weights4, mode)

    # Misaligned spatial dim (H*W = 40000 > 32K, not a multiple of the lane tile)
    # -> exercises the ragged-lane-tile masking path (no padded HBM copies).
    o2 = jax.random.normal(k3, (2, 4, 200, 200), dtype=jnp.float32)
    t2 = jax.random.normal(k4, (2, 4, 200, 200), dtype=jnp.float32)
    check(o2, t2, weights4, "L1")

    # Forced small blocks so N*C = 12 does not divide the row tile
    # -> exercises the ragged-row-tile masking path.
    o3 = jax.random.normal(k5, (3, 4, 16, 16), dtype=jnp.float32)
    t3 = jax.random.normal(k6, (3, 4, 16, 16), dtype=jnp.float32)
    check(o3, t3, weights4, "L2", block_bytes=8192)

    if ok:
        print("KERNEL_OK")
</pallas_src>

<mosaic_0001>
module attributes {stable_mosaic.version = 11 : i64} {
  func.func @_loss_kernel(%arg0: i32, %arg1: i32, %arg2: i32, %arg3: memref<8x256xf32, #tpu.memory_space<vmem>>, %arg4: memref<8x256xf32, #tpu.memory_space<vmem>>, %arg5: memref<8x1xf32, #tpu.memory_space<vmem>>, %arg6: memref<1x1x1xf32, #tpu.memory_space<vmem>>, %arg7: memref<8x1xf32, #tpu.memory_space<vmem>>) attributes {dimension_semantics = [#tpu.dimension_semantics<parallel>, #tpu.dimension_semantics<arbitrary>, #tpu.dimension_semantics<arbitrary>], iteration_bounds = array<i64: 1, 1, 1>, scalar_prefetch = 0 : i64, scratch_operands = 1 : i64, tpu.core_type = #tpu.core_type<tc>, window_params = [{transform_indices = @transform_0, window_bounds = array<i64: 8, 256>}, {transform_indices = @transform_1, window_bounds = array<i64: 8, 256>}, {transform_indices = @transform_2, window_bounds = array<i64: 8, 1>}, {transform_indices = @transform_3, window_bounds = array<i64: 1, 1, 1>}]} {
    %c0_i32 = arith.constant 0 : i32
    %0 = arith.cmpi eq, %arg1, %c0_i32 : i32
    %c0_i32_0 = arith.constant 0 : i32
    %1 = arith.cmpi eq, %arg2, %c0_i32_0 : i32
    %2 = arith.andi %0, %1 : i1
    %3 = arith.extui %2 : i1 to i32
    %c0_i32_1 = arith.constant 0 : i32
    %4 = arith.cmpi ne, %3, %c0_i32_1 : i32
    scf.if %4 {
      %cst_14 = arith.constant 0.000000e+00 : f32
      %21 = vector.broadcast %cst_14 : f32 to vector<8x1xf32>
      %c0_15 = arith.constant 0 : index
      %c0_16 = arith.constant 0 : index
      %22 = vector.load %arg7[%c0_15, %c0_16] : memref<8x1xf32, #tpu.memory_space<vmem>>, vector<8x1xf32>
      tpu.vector_store %arg7[%c0_15, %c0_16], %21 {strides = array<i32>} : memref<8x1xf32, #tpu.memory_space<vmem>>, vector<8x1xf32>,
    } else {
    }
    %c0 = arith.constant 0 : index
    %c0_2 = arith.constant 0 : index
    %5 = vector.load %arg3[%c0, %c0_2] : memref<8x256xf32, #tpu.memory_space<vmem>>, vector<8x256xf32>
    %c0_3 = arith.constant 0 : index
    %c0_4 = arith.constant 0 : index
    %6 = vector.load %arg4[%c0_3, %c0_4] : memref<8x256xf32, #tpu.memory_space<vmem>>, vector<8x256xf32>
    %7 = arith.subf %5, %6 : vector<8x256xf32>
    %8 = math.absf %7 : vector<8x256xf32>
    %cst = arith.constant dense<0.000000e+00> : vector<8xf32>
    %9 = vector.multi_reduction <add>, %8, %cst [1] : vector<8x256xf32> to vector<8xf32>
    %10 = vector.shape_cast %9 : vector<8xf32> to vector<8x1xf32>
    %c0_5 = arith.constant 0 : index
    %c0_6 = arith.constant 0 : index
    %11 = vector.load %arg5[%c0_5, %c0_6] : memref<8x1xf32, #tpu.memory_space<vmem>>, vector<8x1xf32>
    %12 = arith.mulf %10, %11 : vector<8x1xf32>
    %c0_7 = arith.constant 0 : index
    %c0_8 = arith.constant 0 : index
    %13 = vector.load %arg7[%c0_7, %c0_8] : memref<8x1xf32, #tpu.memory_space<vmem>>, vector<8x1xf32>
    %14 = arith.addf %13, %12 : vector<8x1xf32>
    %c0_9 = arith.constant 0 : index
    %c0_10 = arith.constant 0 : index
    %15 = vector.load %arg7[%c0_9, %c0_10] : memref<8x1xf32, #tpu.memory_space<vmem>>, vector<8x1xf32>
    tpu.vector_store %arg7[%c0_9, %c0_10], %14 {strides = array<i32>} : memref<8x1xf32, #tpu.memory_space<vmem>>, vector<8x1xf32>,
    %c0_i32_11 = arith.constant 0 : i32
    %16 = arith.cmpi eq, %arg1, %c0_i32_11 : i32
    %c0_i32_12 = arith.constant 0 : i32
    %17 = arith.cmpi eq, %arg2, %c0_i32_12 : i32
    %18 = arith.andi %16, %17 : i1
    %19 = arith.extui %18 : i1 to i32
    %c0_i32_13 = arith.constant 0 : i32
    %20 = arith.cmpi ne, %19, %c0_i32_13 : i32
    scf.if %20 {
      %c0_14 = arith.constant 0 : index
      %c0_15 = arith.constant 0 : index
      %21 = vector.load %arg7[%c0_14, %c0_15] : memref<8x1xf32, #tpu.memory_space<vmem>>, vector<8x1xf32>
      %22 = vector.shape_cast %21 : vector<8x1xf32> to vector<1x8x1xf32>
      %cst_16 = arith.constant dense<0.000000e+00> : vector<1xf32>
      %23 = vector.multi_reduction <add>, %22, %cst_16 [1, 2] : vector<1x8x1xf32> to vector<1xf32>
      %24 = vector.shape_cast %23 : vector<1xf32> to vector<1x1x1xf32>
      %25 = vector.extract %24[0, 0, 0] : f32 from vector<1x1x1xf32>
      %26 = vector.broadcast %25 : f32 to vector<1x1x1xf32>
      %c0_17 = arith.constant 0 : index
      %c0_18 = arith.constant 0 : index
      %c0_19 = arith.constant 0 : index
      %27 = vector.load %arg6[%c0_17, %c0_18, %c0_19] : memref<1x1x1xf32, #tpu.memory_space<vmem>>, vector<1x1x1xf32>
      tpu.vector_store %arg6[%c0_17, %c0_18, %c0_19], %26 {strides = array<i32>} : memref<1x1x1xf32, #tpu.memory_space<vmem>>, vector<1x1x1xf32>,
    } else {
    }
    return
  }
  func.func @transform_0(%arg0: i32, %arg1: i32, %arg2: i32) -> (i32, i32) {
    %c1_i32 = arith.constant 1 : i32
    %0 = arith.muli %arg0, %c1_i32 : i32
    %1 = arith.addi %0, %arg1 : i32
    %c0_i32 = arith.constant 0 : i32
    return %1, %arg2 : i32, i32
  }
  func.func @transform_1(%arg0: i32, %arg1: i32, %arg2: i32) -> (i32, i32) {
    %c1_i32 = arith.constant 1 : i32
    %0 = arith.muli %arg0, %c1_i32 : i32
    %1 = arith.addi %0, %arg1 : i32
    %c0_i32 = arith.constant 0 : i32
    return %1, %arg2 : i32, i32
  }
  func.func @transform_2(%arg0: i32, %arg1: i32, %arg2: i32) -> (i32, i32) {
    %c1_i32 = arith.constant 1 : i32
    %0 = arith.muli %arg0, %c1_i32 : i32
    %1 = arith.addi %0, %arg1 : i32
    %c0_i32 = arith.constant 0 : i32
    %c0_i32_0 = arith.constant 0 : i32
    return %1, %c0_i32 : i32, i32
  }
  func.func @transform_3(%arg0: i32, %arg1: i32, %arg2: i32) -> (i32, i32, i32) {
    %c0_i32 = arith.constant 0 : i32
    %c0_i32_0 = arith.constant 0 : i32
    %c0_i32_1 = arith.constant 0 : i32
    return %arg0, %c0_i32, %c0_i32_0 : i32, i32, i32
  }
}

</mosaic_0001>

<llo_original>
// kernel: tpu_custom_call.1
$region0: #{tpu_custom_call.1}
  #allocation0 [shape = 'u32[]', space=smem, size = 0x4, offset = 0x4, fixed_abs, tag = 'smem constant byte address 0x4 - core index']
  #allocation1 [shape = 'u32[144,128]{1,0:T(1,128)}', space=vmem, size = 0x12000, scoped, tag = 'internal scratch']
  #allocation2 [shape = 'f32[8,1]{1,0:T(8,128)}', space=vmem, size = 0x1000, scoped, tag = 'scratch operand']
  %s0 = inlined_call_operand.hbm [shape: f32[8,256], index: 0, kind: input, shape index: {}]
  %s1 = inlined_call_operand.hbm [shape: f32[8,256], index: 1, kind: input, shape index: {}]
  %s2 = inlined_call_operand.vmem [shape: f32[8,1], index: 2, kind: input, shape index: {}]
  %s3 = inlined_call_operand.hbm [shape: f32[1,1,1], index: 3, kind: output, shape index: {}]
  %s4 = sld [smem:[#allocation0]]
  $region38: #{tpu_custom_call.1} parent=0
    _
  %s6 = ssub.s32 1, %s4
  %s7 = scalar_select 0, %s6, %s4
  $region1: #{tpu_custom_call.1} parent=0
    #allocation3 [shape = 'u8[8192]{0}', space=vmem, size = 0x2000, scoped, tag = 'input window, operand 0, single buffered']
    #allocation4 [shape = 's32[1]{0}', space=sflag, size = 0x4, scoped, tag = 'scoped memory for tpu_custom_call.1']
    #allocation5 [shape = 's32[1]{0}', space=sflag, size = 0x4, scoped, tag = 'scoped memory for tpu_custom_call.1']
    #allocation6 [shape = 'u8[8192]{0}', space=vmem, size = 0x2000, scoped, tag = 'input window, operand 1, single buffered']
    #allocation7 [shape = 's32[1]{0}', space=sflag, size = 0x4, scoped, tag = 'scoped memory for tpu_custom_call.1']
    #allocation8 [shape = 'u8[512]{0}', space=vmem, size = 0x400, scoped, tag = 'output window, operand 0, single buffered']
    %8 = vsyncpa [#allocation4], 0
    %9 = vsyncpa [#allocation7], 0
    %10 = vsyncpa [#allocation5], 0
    // Predicated region
    $region2: #{tpu_custom_call.1} parent=1 // pred_check
      _
    $region3: #{tpu_custom_call.1} parent=1 // pred_check_branch
      %12 = sbr.rel (0) target = $region5
    $region4: #{tpu_custom_call.1} parent=1 // pred_region
      %s13 = sadd.s32 0, 0
      %s15 = ssub.s32 256, 256
      %16 = vsyncadd [#allocation4], %s15
      %s17 = smul.addr %s13, 2
      %s18 = smul.addr %s17, 128
      %s19 = scalar_lea.hbm %s0, %s18
      %s21 = sshll.u32 [#allocation3], 4
      %s22 = int_to_ptr.vmem [resolvable:$true] %s21
      %24 = dma.hbm_to_vmem [thread:$0]  %s19, 256, %s22, [#allocation4]
    $region5: #{tpu_custom_call.1} parent=1 // pred_fallthru
      _
    // Predicated region
    $region6: #{tpu_custom_call.1} parent=1 // pred_check
      _
    $region7: #{tpu_custom_call.1} parent=1 // pred_check_branch
      %26 = sbr.rel (0) target = $region9
    $region8: #{tpu_custom_call.1} parent=1 // pred_region
      %s27 = sadd.s32 0, 0
      %s29 = ssub.s32 256, 256
      %30 = vsyncadd [#allocation7], %s29
      %s31 = smul.addr %s27, 2
      %s32 = smul.addr %s31, 128
      %s33 = scalar_lea.hbm %s1, %s32
      %s35 = sshll.u32 [#allocation6], 4
      %s36 = int_to_ptr.vmem [resolvable:$true] %s35
      %38 = dma.hbm_to_vmem [thread:$0]  %s33, 256, %s36, [#allocation7]
    $region9: #{tpu_custom_call.1} parent=1 // pred_fallthru
      _
    // Predicated region
    $region10: #{tpu_custom_call.1} parent=1 // pred_check
      _
    $region11: #{tpu_custom_call.1} parent=1 // pred_check_branch
      %40 = sbr.rel (0) target = $region13
    $region12: #{tpu_custom_call.1} parent=1 // pred_region
      %s41 = sadd.s32 0, 0
      %p42 = scmp.lt.s32.totalorder %s41, 0
      %s43 = scalar_select %p42, %s41, 0
      %s44 = smul.addr %s43, 8
      %s45 = scalar_lea.vmem %s2, %s44
      %s46 = sadd.s32 0, 0
    $region13: #{tpu_custom_call.1} parent=1 // pred_fallthru
      _
    // Predicated region
    $region14: #{tpu_custom_call.1} parent=1 // pred_check
      _
    $region15: #{tpu_custom_call.1} parent=1 // pred_check_branch
      %48 = sbr.rel (0) target = $region17
    $region16: #{tpu_custom_call.1} parent=1 // pred_region
      %49 = dma.done [#allocation4], 256
    $region17: #{tpu_custom_call.1} parent=1 // pred_fallthru
      _
    // Predicated region
    $region18: #{tpu_custom_call.1} parent=1 // pred_check
      _
    $region19: #{tpu_custom_call.1} parent=1 // pred_check_branch
      %51 = sbr.rel (0) target = $region21
    $region20: #{tpu_custom_call.1} parent=1 // pred_region
      %52 = dma.done [#allocation7], 256
    $region21: #{tpu_custom_call.1} parent=1 // pred_fallthru
      _
    %s53 = sadd.s32 0, 0
    %p54 = scmp.lt.s32.totalorder %s53, 0
    %s55 = scalar_select %p54, %s53, 0
    %s56 = smul.addr %s55, 8
    %s57 = scalar_lea.vmem %s2, %s56
    %s58 = sadd.s32 0, 0
    %s59 = sadd.s32 0, 0
    %s60 = sadd.s32 0, 0
    %p61 = scmp.lt.s32.totalorder %s60, 0
    %s62 = scalar_select %p61, %s60, 0
    %s63 = smul.addr %s62, 8
    %s64 = scalar_lea.vmem %s2, %s63
    %s65 = sadd.s32 0, 0
    %p66 = scmp.eq.s32.totalorder 0, 0
    %p67 = scmp.eq.s32.totalorder 0, 0
    %p68 = pnand %p66, %p67
    %p69 = pneg %p68
    // Predicated region
    $region22: #{tpu_custom_call.1} parent=1 // pred_check
      _
    $region23: #{tpu_custom_call.1} parent=1 // pred_check_branch
      %71 = sbr.rel (%p68) target = $region25
    $region24: #{tpu_custom_call.1} parent=1 // pred_region
      %vm72 = vcmask 7168
      %73 = vst.msk [vmem:[#allocation2] sm:$0xff] %vm72, 0.0
    $region25: #{tpu_custom_call.1} parent=1 // pred_fallthru
      _
    %v74 = vld [vmem:[#allocation3] sm:$0xff]
    %v75 = vld [vmem:[#allocation3 + $0x8] sm:$0xff]
    %v76 = vld [vmem:[#allocation6] sm:$0xff]
    %v77 = vld [vmem:[#allocation6 + $0x8] sm:$0xff]
    %v78 = vsub.f32 %v74, %v76
    %v79 = vsub.f32 %v75, %v77
    %v80 = vand.u32 2147483647, %v78
    %v81 = vand.u32 2147483647, %v79
    %v82 = vadd.f32 %v80, %v81
    %83 = vadd.xlane.f32.xlu0 %v82
    %v84 = vpop.xlane.xlu0 %83
    %v85 = vld [vmem:[%s64] sm:$0xff]
    %v86 = vmul.f32 %v84, %v85
    %v87 = vld [vmem:[#allocation2] sm:$0xff]
    %v88 = vadd.f32 %v87, %v86
    %vm89 = vcmask 7168
    %90 = vst.msk [vmem:[#allocation2] sm:$0xff] %vm89, %v88
    // Predicated region
    $region26: #{tpu_custom_call.1} parent=1 // pred_check
      _
    $region27: #{tpu_custom_call.1} parent=1 // pred_check_branch
      %92 = sbr.rel (%p68) target = $region29
    $region28: #{tpu_custom_call.1} parent=1 // pred_region
      %v93 = vld [vmem:[#allocation2] sm:$0xff]
      %v94 = vsel %vm89, %v93, 0.0
      %95 = vadd.xlane.f32.xlu0 %v94
      %v96 = vpop.xlane.xlu0 %95
      %v97 = vrot.slane %v96, 4
      %v98 = vadd.f32 %v96, %v97
      %v99 = vrot.slane %v98, 2
      %v100 = vadd.f32 %v98, %v99
      %v101 = vrot.slane %v100, 1
      %v102 = vadd.f32 %v100, %v101
      %s103 = vtos %v102
      %v104 = vstv %s103
      %vm105 = vcmask 0
      %106 = vst.msk [vmem:[#allocation8] sm:$0x1] %vm105, %v104
    $region29: #{tpu_custom_call.1} parent=1 // pred_fallthru
      _
    // Predicated region
    $region30: #{tpu_custom_call.1} parent=1 // pred_check
      _
    $region31: #{tpu_custom_call.1} parent=1 // pred_check_branch
      %108 = sbr.rel (0) target = $region33
    $region32: #{tpu_custom_call.1} parent=1 // pred_region
      %s110 = ssub.s32 16, 16
      %111 = vsyncadd [#allocation5], %s110
      %s113 = sshll.u32 [#allocation8], 4
      %s114 = int_to_ptr.vmem [resolvable:$true] %s113
      %116 = dma.vmem_to_hbm [thread:$0]  %s114, 16, %s3, [#allocation5]
    $region33: #{tpu_custom_call.1} parent=1 // pred_fallthru
      _
    // Predicated region
    $region34: #{tpu_custom_call.1} parent=1 // pred_check
      _
    $region35: #{tpu_custom_call.1} parent=1 // pred_check_branch
      %118 = sbr.rel (0) target = $region37
    $region36: #{tpu_custom_call.1} parent=1 // pred_region
      %119 = dma.done [#allocation5], 16
    $region37: #{tpu_custom_call.1} parent=1 // pred_fallthru
      _
    %120 = vsyncpa [#allocation4], 1
    %121 = vsyncpa [#allocation7], 1
    %122 = vsyncpa [#allocation5], 1

</llo_original>
